<compile_context>
chip_gen: v7x
topology: tpu7x:2x2x1
jax: 0.10.0
libtpu: 0.0.40
codegen_flags: <defaults>
</compile_context>

<pallas_src>
import functools

import jax
import jax.numpy as jnp
from jax.experimental import pallas as pl
from jax.experimental.pallas import tpu as pltpu

_EPS = 1e-5          # PyTorch InstanceNorm2d default eps
_NEG = -1e30         # additive mask value for max pooling
_MiB = 1024 * 1024


def _border_align_kernel(x_ref, w_ref, pw_ref, o_ref, *, Bt, HW, HWp, pool):
    # x_ref : (Bt*HWp, Cin)  bf16  -- Bt batch items folded into the M dim
    # w_ref : (Cin, Cn)      bf16  -- 1x1-conv weight (channel tile j)
    # pw_ref: (HWp, Cn)      f32   -- static pooling weights / additive mask
    # o_ref : (1, Bt, Cn)    f32
    x = x_ref[...]
    w = w_ref[...]

    # 1x1 conv == single MXU matmul over all folded batch items, f32 accum.
    y = jnp.dot(x, w, preferred_element_type=jnp.float32)      # (Bt*HWp, Cn)
    Cn = y.shape[-1]
    # Layout-preserving: HWp % 8 == 0 and Cn is lane-aligned (or full width).
    y = y.reshape(Bt, HWp, Cn)

    inv_hw = 1.0 / HW                                           # real HW count

    if HWp != HW:
        # Row-validity mask for zero-padded spatial rows (built once per step).
        ridx = jax.lax.broadcasted_iota(jnp.int32, (HWp, Cn), 0)
        rowmask = (ridx < HW).astype(jnp.float32)[None]         # (1, HWp, Cn)
    else:
        rowmask = None

    def inorm_relu(v, remask):
        # Fused single-pass stats: mean and mean-of-squares together.
        # Zero-padded rows contribute exactly 0 to both sums.
        m = jnp.sum(v, axis=1, keepdims=True) * inv_hw          # (Bt, 1, Cn)
        s = jnp.sum(v * v, axis=1, keepdims=True) * inv_hw
        var = jnp.maximum(s - m * m, 0.0)                       # cancellation guard
        out = jnp.maximum((v - m) * jax.lax.rsqrt(var + _EPS), 0.0)
        if remask and rowmask is not None:
            out = out * rowmask                                 # re-zero padded rows
        return out

    # Pass 1: re-mask padded rows so pass-2 statistics stay exact.
    y = inorm_relu(y, remask=True)
    # Pass 2: padded rows are neutralized by the pooling weights below.
    y = inorm_relu(y, remask=False)

    pw = pw_ref[...]                                            # (HWp, Cn)
    if pool == "avg":
        # Static weights already include 1/den (and 0 on padded/non-border rows).
        res = jnp.sum(y * pw[None], axis=1)                     # (Bt, Cn)
    else:  # max: pw is 0 on real border rows, -1e30 elsewhere (y >= 0 after ReLU)
        res = jnp.max(y + pw[None], axis=1)                     # (Bt, Cn)

    o_ref[0] = res


def _make_pool_weights(H, W, Cb, HWp, pool):
    """Static (HWp, 4*Cb) pooling weights, row-major spatial flattening.

    Padded rows (idx >= H*W) get weight 0 (avg) / additive -1e30 (max) so they
    never contribute to the pooled result.
    """
    idx = jnp.arange(HWp)
    row = idx // W
    col = idx % W
    valid = idx < H * W
    masks = [
        valid & (col == 0) & (row < H - 1),        # left   : [:, 0:Cb,    :-1,  0]
        valid & (row == 0) & (col >= 1),           # top    : [:, Cb:2Cb,   0,  1:]
        valid & (col == W - 1) & (row >= 1),       # right  : [:, 2Cb:3Cb, 1:,  -1]
        valid & (row == H - 1) & (col < W - 1),    # bottom : [:, 3Cb:,    -1, :-1]
    ]
    cols_out = []
    for m in masks:
        mf = m.astype(jnp.float32)
        if pool == "avg":
            # Guard only matters for degenerate H==1/W==1 borders (PyTorch
            # would divide by zero there); normal shapes are unaffected.
            den = jnp.maximum(jnp.sum(mf), 1.0)
            g = mf / den
        else:
            g = jnp.where(m, 0.0, _NEG)
        cols_out.append(jnp.broadcast_to(g[:, None], (HWp, Cb)))
    return jnp.concatenate(cols_out, axis=1)


def _vmem_capacity_bytes():
    """Per-core VMEM capacity; conservative 64 MiB fallback (safe on all gens)."""
    try:
        info = pltpu.get_tpu_info()
        cap = getattr(info, "vmem_capacity_bytes", None)
        if cap:
            return int(cap)
    except Exception:
        pass
    return 64 * _MiB


def _est_vmem_bytes(Bt, HWp, Cin, Cn):
    """Rough per-step working set: double-buffered tiles + f32 intermediates."""
    rows = Bt * HWp
    x_t = rows * Cin * 2 * 2          # bf16, double-buffered
    w_t = Cin * Cn * 2 * 2            # bf16, double-buffered
    pw_t = HWp * Cn * 4 * 2           # f32,  double-buffered
    o_t = Bt * Cn * 4 * 2
    inter = 4 * rows * Cn * 4         # live f32 copies of y through the two passes
    return x_t + w_t + pw_t + o_t + inter


def border_alignment_channels_last(x_bsc, hw, conv_w, conv_b=None, *, pool="avg"):
    """x_bsc: (B, H*W, Cin) channels-last; hw=(H, W); conv_w: (4*Cb, Cin) -> (B, 4*Cb).

    Channels-last entry point: producers that already hold NHWC activations can
    call this directly and skip the NCHW->NHWC transpose pass entirely.
    """
    B, HW, Cin = x_bsc.shape
    H, W = hw
    assert HW == H * W
    C4 = conv_w.shape[0]
    Cb = C4 // 4

    # conv_b is mathematically cancelled by the InstanceNorm mean subtraction
    # that immediately follows the conv, so it never enters the kernel.
    del conv_b

    # --- generation-aware sizing -------------------------------------------
    cap = _vmem_capacity_bytes()
    budget = int(0.75 * cap)                         # ~48 MiB (64) / ~96 MiB (128)
    row_target = 512 if cap >= 128 * _MiB else 256   # MXU M rows per grid step

    HWp = -(-HW // 8) * 8                            # sublane-aligned spatial rows

    Bt = max(1, row_target // HWp)
    if B >= 2:
        Bt = min(Bt, -(-B // 2))                     # keep >= 2 batch steps (v7x: 2 TCs)

    # Channel tiling (exact: InstanceNorm & border pooling are per-channel);
    # only engaged when the untiled working set would not fit the budget.
    cands = [C4] + [c for c in (1024, 512, 256, 128) if c < C4 and C4 % c == 0]
    Cn = C4
    for c in cands:
        Cn = c
        if _est_vmem_bytes(Bt, HWp, Cin, Cn) <= budget:
            break
    while Bt > 1 and _est_vmem_bytes(Bt, HWp, Cin, Cn) > budget:
        Bt = max(1, Bt // 2)

    Bp = -(-B // Bt) * Bt
    nblk = Bp // Bt
    ncb = C4 // Cn

    # --- host-side data prep (single fused pad + cast pass over x) ----------
    x2d = jnp.pad(x_bsc, ((0, Bp - B), (0, HWp - HW), (0, 0)))
    x2d = x2d.reshape(Bp * HWp, Cin).astype(jnp.bfloat16)
    w_t = conv_w.T.astype(jnp.bfloat16)              # (Cin, C4)
    pw = _make_pool_weights(H, W, Cb, HWp, pool)     # (HWp, C4) f32

    kernel = functools.partial(_border_align_kernel, Bt=Bt, HW=HW, HWp=HWp, pool=pool)

    out = pl.pallas_call(
        kernel,
        out_shape=jax.ShapeDtypeStruct((nblk, Bt, C4), jnp.float32),
        grid=(nblk, ncb),
        in_specs=[
            # x stays resident across the channel axis j (same block index).
            pl.BlockSpec((Bt * HWp, Cin), lambda i, j: (i, 0)),
            pl.BlockSpec((Cin, Cn), lambda i, j: (0, j)),       # conv weight tile
            pl.BlockSpec((HWp, Cn), lambda i, j: (0, j)),       # pooling weights tile
        ],
        out_specs=pl.BlockSpec((1, Bt, Cn), lambda i, j: (i, 0, j)),
        compiler_params=pltpu.CompilerParams(
            dimension_semantics=("parallel", "parallel"),
            vmem_limit_bytes=budget,
        ),
    )(x2d, w_t, pw)
    return out.reshape(Bp, C4)[:B]


def border_alignment(x_nchw, conv_w, conv_b=None, *, pool="avg"):
    """x_nchw: (B, Cin, H, W); conv_w: (4*Cb, Cin); conv_b: (4*Cb,) -> (B, 4*Cb)."""
    B, Cin, H, W = x_nchw.shape
    # Single fused transpose (+pad+bf16 cast inside the channels-last wrapper);
    # callers with NHWC activations should use border_alignment_channels_last.
    x_cl = jnp.transpose(x_nchw, (0, 2, 3, 1)).reshape(B, H * W, Cin)
    return border_alignment_channels_last(x_cl, (H, W), conv_w, conv_b, pool=pool)


def _reference(x_nchw, conv_w, conv_b, *, pool="avg"):
    """Pure-JAX f32 reference mirroring the PyTorch module (bias included)."""
    y = jnp.einsum("bchw,oc->bohw", x_nchw, conv_w) + conv_b[None, :, None, None]

    def inorm(v):
        m = v.mean(axis=(2, 3), keepdims=True)
        var = ((v - m) ** 2).mean(axis=(2, 3), keepdims=True)
        return (v - m) / jnp.sqrt(var + _EPS)

    y = jax.nn.relu(inorm(y))
    y = jax.nn.relu(inorm(y))
    Cb = conv_w.shape[0] // 4
    if pool == "avg":
        ft_l = y[:, :Cb, :-1, 0].mean(axis=2)
        ft_t = y[:, Cb:2 * Cb, 0, 1:].mean(axis=2)
        ft_r = y[:, 2 * Cb:3 * Cb, 1:, -1].mean(axis=2)
        ft_b = y[:, 3 * Cb:, -1, :-1].mean(axis=2)
    else:
        ft_l = y[:, :Cb, :-1, 0].max(axis=2)
        ft_t = y[:, Cb:2 * Cb, 0, 1:].max(axis=2)
        ft_r = y[:, 2 * Cb:3 * Cb, 1:, -1].max(axis=2)
        ft_b = y[:, 3 * Cb:, -1, :-1].max(axis=2)
    return jnp.concatenate([ft_l, ft_t, ft_r, ft_b], axis=1)


if __name__ == "__main__":
    # Small shapes consistent with the module structure (real module uses
    # Cin=2048, Cb=512; scaled down).  Second case (B=3, 7x7) exercises the
    # batch- and spatial-padding paths.
    key = jax.random.PRNGKey(0)
    for (B, Cin, H, W, Cb) in [(2, 32, 8, 8, 32), (3, 32, 7, 7, 32)]:
        C4 = 4 * Cb
        kx, kw, kb, key = jax.random.split(key, 4)
        x = jax.random.normal(kx, (B, Cin, H, W), dtype=jnp.float32)
        conv_w = jax.random.normal(kw, (C4, Cin), dtype=jnp.float32) * (1.0 / jnp.sqrt(float(Cin)))
        conv_b = jax.random.normal(kb, (C4,), dtype=jnp.float32) * 0.01

        # Reference fed with bf16-rounded matmul operands (the kernel quantizes
        # x and w to bf16 for the MXU); bias kept in the reference to verify
        # the InstanceNorm cancellation used by the kernel.
        x_bf = x.astype(jnp.bfloat16).astype(jnp.float32)
        w_bf = conv_w.astype(jnp.bfloat16).astype(jnp.float32)

        for pool in ("avg", "max"):
            out = jax.block_until_ready(border_alignment(x, conv_w, conv_b, pool=pool))
            ref = _reference(x_bf, w_bf, conv_b, pool=pool)
            assert out.shape == (B, C4), (out.shape, (B, C4))
            err = float(jnp.max(jnp.abs(out - ref)))
            assert err < 1e-2, (B, H, W, pool, err)

    print("KERNEL_OK")
</pallas_src>

<mosaic_0001>
module attributes {stable_mosaic.version = 11 : i64} {
  func.func @_border_align_kernel(%arg0: i32, %arg1: i32, %arg2: memref<64x32xbf16, #tpu.memory_space<vmem>>, %arg3: memref<32x128xbf16, #tpu.memory_space<vmem>>, %arg4: memref<64x128xf32, #tpu.memory_space<vmem>>, %arg5: memref<1x1x128xf32, #tpu.memory_space<vmem>>) attributes {dimension_semantics = [#tpu.dimension_semantics<parallel>, #tpu.dimension_semantics<parallel>], iteration_bounds = array<i64: 2, 1>, scalar_prefetch = 0 : i64, scratch_operands = 0 : i64, tpu.core_type = #tpu.core_type<tc>, window_params = [{transform_indices = @transform_0, window_bounds = array<i64: 64, 32>}, {transform_indices = @transform_1, window_bounds = array<i64: 32, 128>}, {transform_indices = @transform_2, window_bounds = array<i64: 64, 128>}, {transform_indices = @transform_3, window_bounds = array<i64: 1, 1, 128>}]} {
    %c0 = arith.constant 0 : index
    %c0_0 = arith.constant 0 : index
    %0 = vector.load %arg2[%c0, %c0_0] : memref<64x32xbf16, #tpu.memory_space<vmem>>, vector<64x32xbf16>
    %c0_1 = arith.constant 0 : index
    %c0_2 = arith.constant 0 : index
    %1 = vector.load %arg3[%c0_1, %c0_2] : memref<32x128xbf16, #tpu.memory_space<vmem>>, vector<32x128xbf16>
    %cst = arith.constant dense<0.000000e+00> : vector<64x128xf32>
    %2 = tpu.matmul %0, %1, %cst {dimension_numbers = #tpu.dot_dimension_numbers<[1], [0], [0], [1], [0, 0, 1, 1], [], []>} : vector<64x32xbf16>, vector<32x128xbf16>, vector<64x128xf32> -> vector<64x128xf32>
    %3 = vector.shape_cast %2 : vector<64x128xf32> to vector<1x64x128xf32>
    %cst_3 = arith.constant dense<0.000000e+00> : vector<1x128xf32>
    %4 = vector.multi_reduction <add>, %3, %cst_3 [1] : vector<1x64x128xf32> to vector<1x128xf32>
    %5 = vector.shape_cast %4 : vector<1x128xf32> to vector<1x1x128xf32>
    %cst_4 = arith.constant 1.562500e-02 : f32
    %6 = vector.broadcast %cst_4 : f32 to vector<1x1x128xf32>
    %7 = arith.mulf %5, %6 : vector<1x1x128xf32>
    %8 = arith.mulf %3, %3 : vector<1x64x128xf32>
    %cst_5 = arith.constant dense<0.000000e+00> : vector<1x128xf32>
    %9 = vector.multi_reduction <add>, %8, %cst_5 [1] : vector<1x64x128xf32> to vector<1x128xf32>
    %10 = vector.shape_cast %9 : vector<1x128xf32> to vector<1x1x128xf32>
    %cst_6 = arith.constant 1.562500e-02 : f32
    %11 = vector.broadcast %cst_6 : f32 to vector<1x1x128xf32>
    %12 = arith.mulf %10, %11 : vector<1x1x128xf32>
    %13 = arith.mulf %7, %7 : vector<1x1x128xf32>
    %14 = arith.subf %12, %13 : vector<1x1x128xf32>
    %cst_7 = arith.constant 0.000000e+00 : f32
    %15 = vector.broadcast %cst_7 : f32 to vector<1x1x128xf32>
    %16 = arith.maximumf %14, %15 : vector<1x1x128xf32>
    %17 = vector.broadcast %7 : vector<1x1x128xf32> to vector<1x64x128xf32>
    %18 = arith.subf %3, %17 : vector<1x64x128xf32>
    %cst_8 = arith.constant 9.99999974E-6 : f32
    %19 = vector.broadcast %cst_8 : f32 to vector<1x1x128xf32>
    %20 = arith.addf %16, %19 : vector<1x1x128xf32>
    %21 = math.rsqrt %20 : vector<1x1x128xf32>
    %22 = vector.broadcast %21 : vector<1x1x128xf32> to vector<1x64x128xf32>
    %23 = arith.mulf %18, %22 : vector<1x64x128xf32>
    %cst_9 = arith.constant 0.000000e+00 : f32
    %24 = vector.broadcast %cst_9 : f32 to vector<1x64x128xf32>
    %25 = arith.maximumf %23, %24 : vector<1x64x128xf32>
    %cst_10 = arith.constant dense<0.000000e+00> : vector<1x128xf32>
    %26 = vector.multi_reduction <add>, %25, %cst_10 [1] : vector<1x64x128xf32> to vector<1x128xf32>
    %27 = vector.shape_cast %26 : vector<1x128xf32> to vector<1x1x128xf32>
    %cst_11 = arith.constant 1.562500e-02 : f32
    %28 = vector.broadcast %cst_11 : f32 to vector<1x1x128xf32>
    %29 = arith.mulf %27, %28 : vector<1x1x128xf32>
    %30 = arith.mulf %25, %25 : vector<1x64x128xf32>
    %cst_12 = arith.constant dense<0.000000e+00> : vector<1x128xf32>
    %31 = vector.multi_reduction <add>, %30, %cst_12 [1] : vector<1x64x128xf32> to vector<1x128xf32>
    %32 = vector.shape_cast %31 : vector<1x128xf32> to vector<1x1x128xf32>
    %cst_13 = arith.constant 1.562500e-02 : f32
    %33 = vector.broadcast %cst_13 : f32 to vector<1x1x128xf32>
    %34 = arith.mulf %32, %33 : vector<1x1x128xf32>
    %35 = arith.mulf %29, %29 : vector<1x1x128xf32>
    %36 = arith.subf %34, %35 : vector<1x1x128xf32>
    %cst_14 = arith.constant 0.000000e+00 : f32
    %37 = vector.broadcast %cst_14 : f32 to vector<1x1x128xf32>
    %38 = arith.maximumf %36, %37 : vector<1x1x128xf32>
    %39 = vector.broadcast %29 : vector<1x1x128xf32> to vector<1x64x128xf32>
    %40 = arith.subf %25, %39 : vector<1x64x128xf32>
    %cst_15 = arith.constant 9.99999974E-6 : f32
    %41 = vector.broadcast %cst_15 : f32 to vector<1x1x128xf32>
    %42 = arith.addf %38, %41 : vector<1x1x128xf32>
    %43 = math.rsqrt %42 : vector<1x1x128xf32>
    %44 = vector.broadcast %43 : vector<1x1x128xf32> to vector<1x64x128xf32>
    %45 = arith.mulf %40, %44 : vector<1x64x128xf32>
    %cst_16 = arith.constant 0.000000e+00 : f32
    %46 = vector.broadcast %cst_16 : f32 to vector<1x64x128xf32>
    %47 = arith.maximumf %45, %46 : vector<1x64x128xf32>
    %c0_17 = arith.constant 0 : index
    %c0_18 = arith.constant 0 : index
    %48 = vector.load %arg4[%c0_17, %c0_18] : memref<64x128xf32, #tpu.memory_space<vmem>>, vector<64x128xf32>
    %49 = vector.shape_cast %48 : vector<64x128xf32> to vector<1x64x128xf32>
    %50 = arith.mulf %47, %49 : vector<1x64x128xf32>
    %cst_19 = arith.constant dense<0.000000e+00> : vector<1x128xf32>
    %51 = vector.multi_reduction <add>, %50, %cst_19 [1] : vector<1x64x128xf32> to vector<1x128xf32>
    %c0_20 = arith.constant 0 : index
    %c0_21 = arith.constant 0 : index
    %c0_22 = arith.constant 0 : index
    %52 = vector.load %arg5[%c0_20, %c0_21, %c0_22] : memref<1x1x128xf32, #tpu.memory_space<vmem>>, vector<1x1x128xf32>
    %53 = vector.shape_cast %52 : vector<1x1x128xf32> to vector<1x128xf32>
    %54 = vector.shape_cast %51 : vector<1x128xf32> to vector<1x1x128xf32>
    tpu.vector_store %arg5[%c0_20, %c0_21, %c0_22], %54 {strides = array<i32>} : memref<1x1x128xf32, #tpu.memory_space<vmem>>, vector<1x1x128xf32>,
    return
  }
  func.func @transform_0(%arg0: i32, %arg1: i32) -> (i32, i32) {
    %c0_i32 = arith.constant 0 : i32
    %c0_i32_0 = arith.constant 0 : i32
    return %arg0, %c0_i32 : i32, i32
  }
  func.func @transform_1(%arg0: i32, %arg1: i32) -> (i32, i32) {
    %c0_i32 = arith.constant 0 : i32
    %c0_i32_0 = arith.constant 0 : i32
    return %c0_i32, %arg1 : i32, i32
  }
  func.func @transform_2(%arg0: i32, %arg1: i32) -> (i32, i32) {
    %c0_i32 = arith.constant 0 : i32
    %c0_i32_0 = arith.constant 0 : i32
    return %c0_i32, %arg1 : i32, i32
  }
  func.func @transform_3(%arg0: i32, %arg1: i32) -> (i32, i32, i32) {
    %c0_i32 = arith.constant 0 : i32
    %c0_i32_0 = arith.constant 0 : i32
    return %arg0, %c0_i32, %arg1 : i32, i32, i32
  }
}

</mosaic_0001>

<llo_original>
// kernel: tpu_custom_call.1
$region0: #{tpu_custom_call.1}
  #allocation0 [shape = 'u32[]', space=smem, size = 0x4, offset = 0x4, fixed_abs, tag = 'smem constant byte address 0x4 - core index']
  #allocation1 [shape = 'u32[144,128]{1,0:T(1,128)}', space=vmem, size = 0x12000, scoped, tag = 'internal scratch']
  %s0 = inlined_call_operand.vmem [shape: bf16[128,32], index: 0, kind: input, shape index: {}]
  %s1 = inlined_call_operand.vmem [shape: bf16[32,128], index: 1, kind: input, shape index: {}]
  %s2 = inlined_call_operand.vmem [shape: f32[64,128], index: 2, kind: input, shape index: {}]
  %s3 = inlined_call_operand.hbm [shape: f32[2,1,128], index: 3, kind: output, shape index: {}]
  %s4 = sld [smem:[#allocation0]]
  $region45: #{tpu_custom_call.1} parent=0
    _
  %s6 = ssub.s32 1, %s4
  %s7 = scalar_select 0, %s6, %s4
  $region1: #{tpu_custom_call.1} parent=0
    #allocation2 [shape = 'u8[1024]{0}', space=vmem, size = 0x400, scoped, tag = 'output window, operand 0']
    #allocation3 [shape = 's32[2]{0}', space=sflag, size = 0x8, scoped, tag = 'scoped memory for tpu_custom_call.1']
    %8 = vsyncpa [#allocation3], 0
    %s9 = scalar_lea.sflag [#allocation3], 1
    %10 = vsyncpa %s9, 0
    loop: start=0, step=1, limit=4
    $region2: #{tpu_custom_call.1} parent=1 // loop_pre_header
      _
    $region3: #{tpu_custom_call.1} parent=1 // loop_header
      %s12 = sphi 0, %s16
      %p13 = scmp.ge.s32.totalorder %s12, 4
      %s19 = sphi 0, %s31
      %s20 = sphi 0, %s27
      %s21 = sphi 0, %s19
      %s22 = sphi 0, %s20
      %s23 = sphi 0, %s21
      %s24 = sphi 0, %s22
      %s34 = sphi 0, %s36
      %s37 = sphi 0, %s34
      %s38 = sphi 0, %s37
      %s54 = sphi 0, %s38
      %s60 = sphi 0, %s62
      %s63 = sphi 0, %s60
      %s64 = sphi 0, %s63
      %s80 = sphi 0, %s64
      %s86 = sphi 0, %s88
      %s89 = sphi 0, %s86
      %s90 = sphi 0, %s89
      %s106 = sphi 0, %s90
      %s114 = sphi 0, %s116
      %s117 = sphi 0, %s114
      %s118 = sphi 0, %s117
      %s134 = sphi 0, %s118
    $region4: #{tpu_custom_call.1} parent=1 // loop_header_branch
      %15 = sbr.rel (%p13) target = $region8
    $region5: #{tpu_custom_call.1} parent=1 // loop_body
      %s17 = ssub.s32 %s12, 1
      %s18 = ssub.s32 %s12, 2
      %s25 = sadd.s32 1, %s20
      %p26 = scmp.ge.s32.totalorder %s25, 1
      %s27 = scalar_select %p26, 0, %s25
      %s28 = sadd.s32 1, %s19
      %s29 = scalar_select %p26, %s28, %s19
      %p30 = scmp.ge.s32.totalorder %s29, 2
      %s31 = scalar_select %p30, 0, %s29
      %s32 = ssub.s32 %s19, %s31
      %p33 = scmp.eq.s32.totalorder %s32, 0
      %s35 = sadd.s32 %s34, 1
      %s36 = scalar_select %p33, %s34, %s35
      %p39 = pneg %p33
      %p40 = scmp.eq.s32.totalorder %s12, 1
      %p41 = por %p39, %p40
      %p42 = scmp.ne.s32.totalorder %s34, %s37
      %p43 = scmp.eq.s32.totalorder %s12, 0
      %p44 = por %p42, %p43
      %p45 = scmp.ne.s32.totalorder %s34, %s37
      %p46 = scmp.eq.s32.totalorder %s17, 1
      %p47 = por %p45, %p46
      %p48 = scmp.ne.s32.totalorder %s37, %s38
      %p49 = scmp.eq.s32.totalorder %s17, 0
      %p50 = por %p48, %p49
      %p51 = scmp.ne.s32.totalorder %s37, %s38
      %p52 = scmp.eq.s32.totalorder %s18, 1
      %p53 = por %p51, %p52
      %p55 = scmp.ne.s32.totalorder %s38, %s54
      %p56 = scmp.eq.s32.totalorder %s18, 0
      %p57 = por %p55, %p56
      %s58 = ssub.s32 %s20, %s27
      %p59 = scmp.eq.s32.totalorder %s58, 0
      %s61 = sadd.s32 %s60, 1
      %s62 = scalar_select %p59, %s60, %s61
      %p65 = pneg %p59
      %p66 = scmp.eq.s32.totalorder %s12, 1
      %p67 = por %p65, %p66
      %p68 = scmp.ne.s32.totalorder %s60, %s63
      %p69 = scmp.eq.s32.totalorder %s12, 0
      %p70 = por %p68, %p69
      %p71 = scmp.ne.s32.totalorder %s60, %s63
      %p72 = scmp.eq.s32.totalorder %s17, 1
      %p73 = por %p71, %p72
      %p74 = scmp.ne.s32.totalorder %s63, %s64
      %p75 = scmp.eq.s32.totalorder %s17, 0
      %p76 = por %p74, %p75
      %p77 = scmp.ne.s32.totalorder %s63, %s64
      %p78 = scmp.eq.s32.totalorder %s18, 1
      %p79 = por %p77, %p78
      %p81 = scmp.ne.s32.totalorder %s64, %s80
      %p82 = scmp.eq.s32.totalorder %s18, 0
      %p83 = por %p81, %p82
      %s84 = ssub.s32 %s20, %s27
      %p85 = scmp.eq.s32.totalorder %s84, 0
      %s87 = sadd.s32 %s86, 1
      %s88 = scalar_select %p85, %s86, %s87
      %p91 = pneg %p85
      %p92 = scmp.eq.s32.totalorder %s12, 1
      %p93 = por %p91, %p92
      %p94 = scmp.ne.s32.totalorder %s86, %s89
      %p95 = scmp.eq.s32.totalorder %s12, 0
      %p96 = por %p94, %p95
      %p97 = scmp.ne.s32.totalorder %s86, %s89
      %p98 = scmp.eq.s32.totalorder %s17, 1
      %p99 = por %p97, %p98
      %p100 = scmp.ne.s32.totalorder %s89, %s90
      %p101 = scmp.eq.s32.totalorder %s17, 0
      %p102 = por %p100, %p101
      %p103 = scmp.ne.s32.totalorder %s89, %s90
      %p104 = scmp.eq.s32.totalorder %s18, 1
      %p105 = por %p103, %p104
      %p107 = scmp.ne.s32.totalorder %s90, %s106
      %p108 = scmp.eq.s32.totalorder %s18, 0
      %p109 = por %p107, %p108
      %s110 = ssub.s32 %s19, %s31
      %s111 = ssub.s32 %s20, %s27
      %s112 = sor.u32 %s110, %s111
      %p113 = scmp.eq.s32.totalorder %s112, 0
      %s115 = sadd.s32 %s114, 1
      %s116 = scalar_select %p113, %s114, %s115
      %p119 = pneg %p113
      %p120 = scmp.eq.s32.totalorder %s12, 1
      %p121 = por %p119, %p120
      %p122 = scmp.ne.s32.totalorder %s114, %s117
      %p123 = scmp.eq.s32.totalorder %s12, 0
      %p124 = por %p122, %p123
      %p125 = scmp.ne.s32.totalorder %s114, %s117
      %p126 = scmp.eq.s32.totalorder %s17, 1
      %p127 = por %p125, %p126
      %p128 = scmp.ne.s32.totalorder %s117, %s118
      %p129 = scmp.eq.s32.totalorder %s17, 0
      %p130 = por %p128, %p129
      %p131 = scmp.ne.s32.totalorder %s117, %s118
      %p132 = scmp.eq.s32.totalorder %s18, 1
      %p133 = por %p131, %p132
      %p135 = scmp.ne.s32.totalorder %s118, %s134
      %p136 = scmp.eq.s32.totalorder %s18, 0
      %p137 = por %p135, %p136
      %p138 = scmp.le.s32.totalorder 1, %s12
      %p139 = scmp.lt.s32.totalorder %s12, 3
      %p140 = pnand %p138, %p139
      %p141 = pneg %p140
      // Predicated region
      $region9: #{tpu_custom_call.1} parent=5 // pred_check
        _
      $region10: #{tpu_custom_call.1} parent=5 // pred_check_branch
        %143 = sbr.rel (%p140) target = $region12
      $region11: #{tpu_custom_call.1} parent=5 // pred_region
        %s144 = ssub.s32 %s12, 1
        // Predicated region
        $region13: #{tpu_custom_call.1} parent=11 // pred_check
          %p145 = pneg %p76
        $region14: #{tpu_custom_call.1} parent=11 // pred_check_branch
          %147 = sbr.rel (%p145) target = $region16
        $region15: #{tpu_custom_call.1} parent=11 // pred_region
          %p148 = scmp.lt.s32.totalorder %s22, 0
          %s149 = scalar_select %p148, %s22, 0
          %s150 = smul.addr %s149, 4
          %s151 = scalar_lea.vmem %s1, %s150
        $region16: #{tpu_custom_call.1} parent=11 // pred_fallthru
          _
        // Predicated region
        $region17: #{tpu_custom_call.1} parent=11 // pred_check
          %p152 = pneg %p102
        $region18: #{tpu_custom_call.1} parent=11 // pred_check_branch
          %154 = sbr.rel (%p152) target = $region20
        $region19: #{tpu_custom_call.1} parent=11 // pred_region
          %p155 = scmp.lt.s32.totalorder %s22, 0
          %s156 = scalar_select %p155, %s22, 0
          %s157 = smul.addr %s156, 8
          %s158 = scalar_lea.vmem %s2, %s157
        $region20: #{tpu_custom_call.1} parent=11 // pred_fallthru
          _
      $region12: #{tpu_custom_call.1} parent=5 // pred_fallthru
        _
      %p159 = scmp.lt.s32.totalorder %s12, 2
      // Predicated region
      $region21: #{tpu_custom_call.1} parent=5 // pred_check
        %p160 = pneg %p159
      $region22: #{tpu_custom_call.1} parent=5 // pred_check_branch
        %162 = sbr.rel (%p160) target = $region24
      $region23: #{tpu_custom_call.1} parent=5 // pred_region
        // Predicated region
        $region25: #{tpu_custom_call.1} parent=23 // pred_check
          %p163 = pneg %p44
        $region26: #{tpu_custom_call.1} parent=23 // pred_check_branch
          %165 = sbr.rel (%p163) target = $region28
        $region27: #{tpu_custom_call.1} parent=23 // pred_region
          %s166 = smul.u32 8, %s19
          %p167 = scmp.lt.s32.totalorder %s166, 15
          %s168 = scalar_select %p167, %s166, 15
          %s169 = smul.addr %s168, 4
          %s170 = scalar_lea.vmem %s0, %s169
          %s171 = smul.u32 8, %s19
        $region28: #{tpu_custom_call.1} parent=23 // pred_fallthru
          _
      $region24: #{tpu_custom_call.1} parent=5 // pred_fallthru
        _
      %p172 = scmp.le.s32.totalorder 1, %s12
      %p173 = scmp.lt.s32.totalorder %s12, 3
      %p174 = pnand %p172, %p173
      %p175 = pneg %p174
      // Predicated region
      $region29: #{tpu_custom_call.1} parent=5 // pred_check
        _
      $region30: #{tpu_custom_call.1} parent=5 // pred_check_branch
        %177 = sbr.rel (%p174) target = $region32
      $region31: #{tpu_custom_call.1} parent=5 // pred_region
        %s178 = ssub.s32 %s12, 1
        %s179 = smul.u32 8, %s21
        %p180 = scmp.lt.s32.totalorder %s179, 15
        %s181 = scalar_select %p180, %s179, 15
        %s182 = smul.addr %s181, 4
        %s183 = scalar_lea.vmem %s0, %s182
        %p184 = pneg %p50
        %p185 = pneg %p47
        %p186 = scmp.lt.s32.totalorder %s22, 0
        %s187 = scalar_select %p186, %s22, 0
        %s188 = smul.addr %s187, 4
        %s189 = scalar_lea.vmem %s1, %s188
        %p190 = pneg %p76
        %p191 = pneg %p73
        %p192 = scmp.lt.s32.totalorder %s22, 0
        %s193 = scalar_select %p192, %s22, 0
        %s194 = smul.addr %s193, 8
        %s195 = scalar_lea.vmem %s2, %s194
        %p196 = pneg %p102
        %p197 = pneg %p99
        %p198 = pneg %p130
        %p199 = pneg %p127
        %s200 = sand.u32 %s117, 1
        %s201 = scalar_lea.sflag [#allocation3], %s200
        %s202 = sand.u32 %s117, 1
        %s203 = scalar_lea.vmem [#allocation2], %s202
        %s204 = smul.u32 8, %s21
        %p205 = scmp.lt.s32.totalorder %s204, 15
        %s206 = scalar_select %p205, %s204, 15
        %s207 = smul.addr %s206, 4
        %s208 = scalar_lea.vmem %s0, %s207
        %s209 = smul.u32 8, %s21
        %p210 = scmp.lt.s32.totalorder %s22, 0
        %s211 = scalar_select %p210, %s22, 0
        %s212 = smul.addr %s211, 4
        %s213 = scalar_lea.vmem %s1, %s212
        %p214 = scmp.lt.s32.totalorder %s22, 0
        %s215 = scalar_select %p214, %s22, 0
        %s216 = smul.addr %s215, 8
        %s217 = scalar_lea.vmem %s2, %s216
        %v219 = vld [vmem:[%s208] sm:$0xf]
        %v220 = vld [vmem:[%s208 + $0x4] sm:$0xf]
        %v221 = vld [vmem:[%s208 + $0x8] sm:$0xf]
        %v222 = vld [vmem:[%s208 + $0xc] sm:$0xf]
        %v223 = vld [vmem:[%s208 + $0x10] sm:$0xf]
        %v224 = vld [vmem:[%s208 + $0x14] sm:$0xf]
        %v225 = vld [vmem:[%s208 + $0x18] sm:$0xf]
        %v226 = vld [vmem:[%s208 + $0x1c] sm:$0xf]
        %v227 = vld [vmem:[%s213] sm:$0xf]
        %v228 = vld [vmem:[%s213 + $0x4] sm:$0xf]
        %v229 = vld [vmem:[%s213 + $0x8] sm:$0xf]
        %v230 = vld [vmem:[%s213 + $0xc] sm:$0xf]
        %v239 = vunpack.c.l.b16 %v219
        %v240 = vunpack.c.l.b16 %v220
        %v241 = vunpack.c.l.b16 %v221
        %v242 = vunpack.c.l.b16 %v222
        %v243 = vunpack.c.l.b16 %v223
        %v244 = vunpack.c.l.b16 %v224
        %v245 = vunpack.c.l.b16 %v225
        %v246 = vunpack.c.l.b16 %v226
        %v247 = vpack.c.b16 %v240, %v239
        %v248 = vpack.c.b16 %v242, %v241
        %v249 = vpack.c.b16 %v244, %v243
        %v250 = vpack.c.b16 %v246, %v245
        %v255 = vunpack.c.l.b16 %v227
        %v256 = vunpack.c.l.b16 %v228
        %v257 = vunpack.c.l.b16 %v229
        %v258 = vunpack.c.l.b16 %v230
        %v259 = vpack.c.b16 %v256, %v255
        %v260 = vpack.c.b16 %v258, %v257
        %vm263 = vcmask 261120
        %v265 = vsel %vm263, %v247, 0
        %v268 = vsel %vm263, %v248, 0
        %v271 = vsel %vm263, %v249, 0
        %v274 = vsel %vm263, %v250, 0
        %276 = vmatprep.subr.bf16.mxu0 0
        %277 = vmatpush1.bf16.msra.mxu0 %v259
        %278 = vmatprep.subr.bf16.mxu0 0
        %279 = vmatpush1.bf16.msra.mxu0 %v260
        %280 = vmatprep.subr.bf16.mxu0 0
        %281 = vmatpush1.bf16.msra.mxu0 0
        %282 = vmatprep.subr.bf16.mxu0 0
        %283 = vmatpush1.bf16.msra.mxu0 0
        %284 = vmatprep.subr.bf16.mxu0 0
        %285 = vmatpush1.bf16.msra.mxu0 0
        %286 = vmatprep.subr.bf16.mxu0 0
        %287 = vmatpush1.bf16.msra.mxu0 0
        %288 = vmatprep.subr.bf16.mxu0 0
        %289 = vmatpush1.bf16.msra.mxu0 0
        %290 = vmatprep.subr.bf16.mxu0 0
        %291 = vmatpush1.bf16.msra.mxu0 0
        %292 = vmatprep.subr.bf16.mxu0 0
        %293 = vmatpush1.bf16.msra.mxu0 0
        %294 = vmatprep.subr.bf16.mxu0 0
        %295 = vmatpush1.bf16.msra.mxu0 0
        %296 = vmatprep.subr.bf16.mxu0 0
        %297 = vmatpush1.bf16.msra.mxu0 0
        %298 = vmatprep.subr.bf16.mxu0 0
        %299 = vmatpush1.bf16.msra.mxu0 0
        %300 = vmatprep.subr.bf16.mxu0 0
        %301 = vmatpush1.bf16.msra.mxu0 0
        %302 = vmatprep.subr.bf16.mxu0 0
        %303 = vmatpush1.bf16.msra.mxu0 0
        %304 = vmatprep.subr.bf16.mxu0 0
        %305 = vmatpush1.bf16.msra.mxu0 0
        %306 = vmatprep.subr.bf16.mxu0 0
        %307 = vmatpush1.bf16.msra.mxu0 0
        %308 = vmatprep.mubr.bf16.mxu0 0
        %309 = vmatmul.mubr.bf16.gmra.mrb[0].mxu0 %v265
        %v310 = vpop.f32.mrb[0].mxu0
        %v311 = vadd.f32 0.0, %v310
        %v312 = vpop.f32.mrb[0].mxu0
        %v313 = vpop.f32.mrb[0].mxu0
        %v314 = vadd.f32 0.0, %v313
        %v315 = vpop.f32.mrb[0].mxu0
        %316 = vmatprep.mubr.bf16.mxu0 0
        %317 = vmatmul.mubr.bf16.gmra.mrb[0].mxu0 %v268
        %v318 = vpop.f32.mrb[0].mxu0
        %v319 = vadd.f32 0.0, %v318
        %v320 = vpop.f32.mrb[0].mxu0
        %v321 = vpop.f32.mrb[0].mxu0
        %v322 = vadd.f32 0.0, %v321
        %v323 = vpop.f32.mrb[0].mxu0
        %324 = vmatprep.mubr.bf16.mxu0 0
        %325 = vmatmul.mubr.bf16.gmra.mrb[0].mxu0 %v271
        %v326 = vpop.f32.mrb[0].mxu0
        %v327 = vadd.f32 0.0, %v326
        %v328 = vpop.f32.mrb[0].mxu0
        %v329 = vpop.f32.mrb[0].mxu0
        %v330 = vadd.f32 0.0, %v329
        %v331 = vpop.f32.mrb[0].mxu0
        %332 = vmatprep.mubr.bf16.mxu0 0
        %333 = vmatmul.mubr.bf16.gmra.mrb[0].mxu0 %v274
        %v334 = vpop.f32.mrb[0].mxu0
        %v335 = vadd.f32 0.0, %v334
        %v336 = vpop.f32.mrb[0].mxu0
        %v337 = vpop.f32.mrb[0].mxu0
        %v338 = vadd.f32 0.0, %v337
        %v339 = vpop.f32.mrb[0].mxu0
        %340 = vdwg.mxu0
        %v341 = vadd.f32 %v311, %v314
        %v342 = vadd.f32 %v341, %v319
        %v343 = vadd.f32 %v342, %v322
        %v344 = vadd.f32 %v343, %v327
        %v345 = vadd.f32 %v344, %v330
        %v346 = vadd.f32 %v345, %v335
        %v347 = vadd.f32 %v346, %v338
        %v348 = vrot.slane %v347, 4
        %v349 = vadd.f32 %v347, %v348
        %v350 = vrot.slane %v349, 2
        %v351 = vadd.f32 %v349, %v350
        %v352 = vrot.slane %v351, 1
        %v353 = vadd.f32 %v351, %v352
        %v354 = vmul.f32 %v353, 0.015625
        %v355 = vmul.f32 %v311, %v311
        %v356 = vmul.f32 %v314, %v314
        %v357 = vmul.f32 %v319, %v319
        %v358 = vmul.f32 %v322, %v322
        %v359 = vmul.f32 %v327, %v327
        %v360 = vmul.f32 %v330, %v330
        %v361 = vmul.f32 %v335, %v335
        %v362 = vmul.f32 %v338, %v338
        %v363 = vadd.f32 %v355, %v356
        %v364 = vadd.f32 %v363, %v357
        %v365 = vadd.f32 %v364, %v358
        %v366 = vadd.f32 %v365, %v359
        %v367 = vadd.f32 %v366, %v360
        %v368 = vadd.f32 %v367, %v361
        %v369 = vadd.f32 %v368, %v362
        %v370 = vrot.slane %v369, 4
        %v371 = vadd.f32 %v369, %v370
        %v372 = vrot.slane %v371, 2
        %v373 = vadd.f32 %v371, %v372
        %v374 = vrot.slane %v373, 1
        %v375 = vadd.f32 %v373, %v374
        %v376 = vmul.f32 %v375, 0.015625
        %v377 = vmul.f32 %v354, %v354
        %v378 = vsub.f32 %v376, %v377
        %v379 = vmax.f32 %v378, 0.0
        %v380 = vsub.f32 %v311, %v354
        %v381 = vsub.f32 %v314, %v354
        %v382 = vsub.f32 %v319, %v354
        %v383 = vsub.f32 %v322, %v354
        %v384 = vsub.f32 %v327, %v354
        %v385 = vsub.f32 %v330, %v354
        %v386 = vsub.f32 %v335, %v354
        %v387 = vsub.f32 %v338, %v354
        %v388 = vadd.f32 %v379, 1e-05
        %v389 = vrsqrt.pop %v388
        %v390 = vmul.f32 %v380, %v389
        %v391 = vmul.f32 %v381, %v389
        %v392 = vmul.f32 %v382, %v389
        %v393 = vmul.f32 %v383, %v389
        %v394 = vmul.f32 %v384, %v389
        %v395 = vmul.f32 %v385, %v389
        %v396 = vmul.f32 %v386, %v389
        %v397 = vmul.f32 %v387, %v389
        %v398 = vmax.f32 %v390, 0.0
        %v399 = vmax.f32 %v391, 0.0
        %v400 = vmax.f32 %v392, 0.0
        %v401 = vmax.f32 %v393, 0.0
        %v402 = vmax.f32 %v394, 0.0
        %v403 = vmax.f32 %v395, 0.0
        %v404 = vmax.f32 %v396, 0.0
        %v405 = vmax.f32 %v397, 0.0
        %v406 = vadd.f32 %v398, %v399
        %v407 = vadd.f32 %v406, %v400
        %v408 = vadd.f32 %v407, %v401
        %v409 = vadd.f32 %v408, %v402
        %v410 = vadd.f32 %v409, %v403
        %v411 = vadd.f32 %v410, %v404
        %v412 = vadd.f32 %v411, %v405
        %v413 = vrot.slane %v412, 4
        %v414 = vadd.f32 %v412, %v413
        %v415 = vrot.slane %v414, 2
        %v416 = vadd.f32 %v414, %v415
        %v417 = vrot.slane %v416, 1
        %v418 = vadd.f32 %v416, %v417
        %v419 = vmul.f32 %v418, 0.015625
        %v420 = vmul.f32 %v398, %v398
        %v421 = vmul.f32 %v399, %v399
        %v422 = vmul.f32 %v400, %v400
        %v423 = vmul.f32 %v401, %v401
        %v424 = vmul.f32 %v402, %v402
        %v425 = vmul.f32 %v403, %v403
        %v426 = vmul.f32 %v404, %v404
        %v427 = vmul.f32 %v405, %v405
        %v428 = vadd.f32 %v420, %v421
        %v429 = vadd.f32 %v428, %v422
        %v430 = vadd.f32 %v429, %v423
        %v431 = vadd.f32 %v430, %v424
        %v432 = vadd.f32 %v431, %v425
        %v433 = vadd.f32 %v432, %v426
        %v434 = vadd.f32 %v433, %v427
        %v435 = vrot.slane %v434, 4
        %v436 = vadd.f32 %v434, %v435
        %v437 = vrot.slane %v436, 2
        %v438 = vadd.f32 %v436, %v437
        %v439 = vrot.slane %v438, 1
        %v440 = vadd.f32 %v438, %v439
        %v441 = vmul.f32 %v440, 0.015625
        %v442 = vmul.f32 %v419, %v419
        %v443 = vsub.f32 %v441, %v442
        %v444 = vmax.f32 %v443, 0.0
        %v445 = vsub.f32 %v398, %v419
        %v446 = vsub.f32 %v399, %v419
        %v447 = vsub.f32 %v400, %v419
        %v448 = vsub.f32 %v401, %v419
        %v449 = vsub.f32 %v402, %v419
        %v450 = vsub.f32 %v403, %v419
        %v451 = vsub.f32 %v404, %v419
        %v452 = vsub.f32 %v405, %v419
        %v453 = vadd.f32 %v444, 1e-05
        %v454 = vrsqrt.pop %v453
        %v455 = vmul.f32 %v445, %v454
        %v456 = vmul.f32 %v446, %v454
        %v457 = vmul.f32 %v447, %v454
        %v458 = vmul.f32 %v448, %v454
        %v459 = vmul.f32 %v449, %v454
        %v460 = vmul.f32 %v450, %v454
        %v461 = vmul.f32 %v451, %v454
        %v462 = vmul.f32 %v452, %v454
        %v463 = vmax.f32 %v455, 0.0
        %v464 = vmax.f32 %v456, 0.0
        %v465 = vmax.f32 %v457, 0.0
        %v466 = vmax.f32 %v458, 0.0
        %v467 = vmax.f32 %v459, 0.0
        %v468 = vmax.f32 %v460, 0.0
        %v469 = vmax.f32 %v461, 0.0
        %v470 = vmax.f32 %v462, 0.0
        %v471 = vld [vmem:[%s217] sm:$0xff]
        %v472 = vld [vmem:[%s217 + $0x8] sm:$0xff]
        %v473 = vld [vmem:[%s217 + $0x10] sm:$0xff]
        %v474 = vld [vmem:[%s217 + $0x18] sm:$0xff]
        %v475 = vld [vmem:[%s217 + $0x20] sm:$0xff]
        %v476 = vld [vmem:[%s217 + $0x28] sm:$0xff]
        %v477 = vld [vmem:[%s217 + $0x30] sm:$0xff]
        %v478 = vld [vmem:[%s217 + $0x38] sm:$0xff]
        %v479 = vmul.f32 %v463, %v471
        %v480 = vmul.f32 %v464, %v472
        %v481 = vmul.f32 %v465, %v473
        %v482 = vmul.f32 %v466, %v474
        %v483 = vmul.f32 %v467, %v475
        %v484 = vmul.f32 %v468, %v476
        %v485 = vmul.f32 %v469, %v477
        %v486 = vmul.f32 %v470, %v478
        %v487 = vadd.f32 %v479, %v480
        %v488 = vadd.f32 %v487, %v481
        %v489 = vadd.f32 %v488, %v482
        %v490 = vadd.f32 %v489, %v483
        %v491 = vadd.f32 %v490, %v484
        %v492 = vadd.f32 %v491, %v485
        %v493 = vadd.f32 %v492, %v486
        %v494 = vrot.slane %v493, 4
        %v495 = vadd.f32 %v493, %v494
        %v496 = vrot.slane %v495, 2
        %v497 = vadd.f32 %v495, %v496
        %v498 = vrot.slane %v497, 1
        %v499 = vadd.f32 %v497, %v498
        %500 = vst [vmem:[%s203] sm:$0x1] %v499
        %s501 = sand.u32 %s117, 1
        %s502 = scalar_lea.sflag [#allocation3], %s501
        %s503 = sand.u32 %s117, 1
        %s504 = scalar_lea.vmem [#allocation2], %s503
        // Predicated region
        $region33: #{tpu_custom_call.1} parent=31 // pred_check
          %p505 = pneg %p127
        $region34: #{tpu_custom_call.1} parent=31 // pred_check_branch
          %507 = sbr.rel (%p505) target = $region36
        $region35: #{tpu_custom_call.1} parent=31 // pred_region
          %s509 = ssub.s32 16, 16
          %510 = vsyncadd %s502, %s509
          %s511 = sadd.s32 %s22, %s21
          %s512 = smul.addr %s511, 16
          %s513 = scalar_lea.hbm %s3, %s512
          %s515 = sshll.u32 %s504, 4
          %s516 = int_to_ptr.vmem [resolvable:$true] %s515
          %518 = dma.vmem_to_hbm [thread:$0]  %s516, 16, %s513, %s502
        $region36: #{tpu_custom_call.1} parent=31 // pred_fallthru
          _
      $region32: #{tpu_custom_call.1} parent=5 // pred_fallthru
        _
      %p519 = scmp.le.s32.totalorder 2, %s12
      // Predicated region
      $region37: #{tpu_custom_call.1} parent=5 // pred_check
        %p520 = pneg %p519
      $region38: #{tpu_custom_call.1} parent=5 // pred_check_branch
        %522 = sbr.rel (%p520) target = $region40
      $region39: #{tpu_custom_call.1} parent=5 // pred_region
        %s523 = ssub.s32 %s12, 2
        // Predicated region
        $region41: #{tpu_custom_call.1} parent=39 // pred_check
          %p524 = pneg %p133
        $region42: #{tpu_custom_call.1} parent=39 // pred_check_branch
          %526 = sbr.rel (%p524) target = $region44
        $region43: #{tpu_custom_call.1} parent=39 // pred_region
          %s527 = sand.u32 %s118, 1
          %s528 = scalar_lea.sflag [#allocation3], %s527
          %s529 = sand.u32 %s118, 1
          %s530 = scalar_lea.vmem [#allocation2], %s529
          %531 = dma.done %s528, 16
        $region44: #{tpu_custom_call.1} parent=39 // pred_fallthru
          _
      $region40: #{tpu_custom_call.1} parent=5 // pred_fallthru
        _
    $region6: #{tpu_custom_call.1} parent=1 // loop_footer
      %s16 = sadd.s32 1, %s12
    $region7: #{tpu_custom_call.1} parent=1 // loop_footer_branch
      %11 = sbr.rel target = $region3
    $region8: #{tpu_custom_call.1} parent=1 // loop_exit
      _
    %532 = vsyncpa [#allocation3], 1
    %s533 = scalar_lea.sflag [#allocation3], 1
    %534 = vsyncpa %s533, 1

</llo_original>
